<compile_context>
chip_gen: v7x
topology: tpu7x:2x2x1
jax: 0.10.0
libtpu: 0.0.40
codegen_flags: <defaults>
</compile_context>

<pallas_src>
import functools

import jax
import jax.numpy as jnp
from jax.experimental import pallas as pl
from jax.experimental.pallas import tpu as pltpu

_NEG = -1e30  # finite "-inf" pad for logits: keeps 0 * log_p == 0 on pad lanes


def _round_up(x, m):
    return (x + m - 1) // m * m


def _cdiv(a, b):
    return -(-a // b)


def _vmem_limit_bytes():
    """~3/4 of physical VMEM (generation-aware); fallback is safe on v7x."""
    try:
        info = pltpu.get_tpu_info()
        cap = getattr(info, "vmem_capacity_bytes", None) or getattr(
            info, "vmem_size_bytes", None)
        if cap:
            return int(cap) * 3 // 4
    except Exception:
        pass
    return 48 * 1024 * 1024


def _loss_newtarget_kernel(out1_ref, tgt_ref, invb_ref, newt_ref, lpart_ref):
    """Single streaming pass over one batch tile.

    Shares one rowmax / one exp / one row-sum between the log-softmax loss
    cross-term and the debiased+masked+renormalized new target (the two
    softmax normalizers cancel after the renormalization).
    """
    x = out1_ref[...].astype(jnp.float32)                    # [TB, Cp]
    t = tgt_ref[...].astype(jnp.float32)                     # [TB, Cp]

    m = jnp.max(x, axis=1, keepdims=True)
    z = x - m
    e = jnp.exp(z)
    s = jnp.sum(e, axis=1, keepdims=True)
    log_p = z - jnp.log(s)                                   # log softmax(output1)

    # Per-class loss partial for this tile: sublane reduce only; the tiny
    # (n_tiles, C) lane/tile reduction is finished in XLA.
    lpart_ref[...] = jnp.sum(t * log_p, axis=0, keepdims=True)[None]

    # softmax(x - log(bias+eps)) masked by candidates and renormalized:
    # work directly with exp(x - m) * 1/(bias+eps); normalizers cancel.
    u = e * invb_ref[...].astype(jnp.float32)                # [TB, Cp]
    r = jnp.where(t > 0, u, 0.0)                             # revisedY > 0 -> 1
    rs = jnp.sum(r, axis=1, keepdims=True)
    rs = jnp.where(rs > 0, rs, 1.0)                          # guard padded rows
    newt_ref[...] = (r / rs).astype(newt_ref.dtype)


@functools.partial(jax.jit, static_argnames=("block_b",))
def proden_records_fused(output1, target, feat, prev_feat_mean, fc_weight_t,
                         fc_bias, *, block_b=None):
    """Returns (loss scalar, updated feat_mean [1, D], new_target [B, C])."""
    B, C = output1.shape

    # ---- tiny XLA glue: feat batch mean -> EMA -> fc matvec -> softmax bias.
    fb = jnp.mean(feat, axis=0, keepdims=True, dtype=jnp.float32)       # [1, D]
    feat_mean = 0.9 * prev_feat_mean.astype(jnp.float32) + 0.1 * fb     # [1, D]
    bias_logits = (jnp.dot(feat_mean, fc_weight_t.astype(jnp.float32),
                           preferred_element_type=jnp.float32)
                   + fc_bias.astype(jnp.float32)[None, :])              # [1, C]
    bias = jax.nn.softmax(bias_logits, axis=1)
    inv_bias = 1.0 / (bias + 1e-9)                                      # [1, C]

    # ---- class-dim padding only when cheap (<= 1/8 extra lanes); otherwise
    # the block's last dim is the full class dim (masked vld/vst).
    c128 = _round_up(C, 128)
    C_p = c128 if (c128 - C) * 8 <= c128 else C

    # ---- batch tile sized from VMEM capacity; chosen to (nearly) divide B.
    vmem_limit = _vmem_limit_bytes()
    if block_b is None:
        budget = vmem_limit // 2          # ~6 f32 (TB, Cp) slabs in flight
        block_b = max(8, min(budget // (6 * C_p * 4), 2048))
    n_tiles = max(1, _cdiv(B, block_b))
    TB = _round_up(_cdiv(B, n_tiles), 8)
    B_pad = TB * n_tiles

    out1_p, tgt_p = output1, target
    if B_pad != B or C_p != C:
        out1_p = jnp.pad(output1, ((0, B_pad - B), (0, C_p - C)),
                         constant_values=_NEG)
        tgt_p = jnp.pad(target, ((0, B_pad - B), (0, C_p - C)))
    invb_p = inv_bias if C_p == C else jnp.pad(inv_bias, ((0, 0), (0, C_p - C)))

    newt, lpart = pl.pallas_call(
        _loss_newtarget_kernel,
        out_shape=(
            jax.ShapeDtypeStruct((B_pad, C_p), target.dtype),        # new target
            jax.ShapeDtypeStruct((n_tiles, 1, C_p), jnp.float32),    # loss parts
        ),
        grid_spec=pltpu.PrefetchScalarGridSpec(
            num_scalar_prefetch=0,
            grid=(n_tiles,),
            in_specs=[
                pl.BlockSpec((TB, C_p), lambda i: (i, 0)),   # output1 (one pass)
                pl.BlockSpec((TB, C_p), lambda i: (i, 0)),   # target  (one pass)
                pl.BlockSpec((1, C_p), lambda i: (0, 0)),    # 1/(bias+eps)
            ],
            out_specs=(
                pl.BlockSpec((TB, C_p), lambda i: (i, 0)),        # new target
                pl.BlockSpec((1, 1, C_p), lambda i: (i, 0, 0)),   # loss partials
            ),
        ),
        compiler_params=pltpu.CompilerParams(
            dimension_semantics=("parallel",),   # batch tiles -> both TCs on v7x
            vmem_limit_bytes=vmem_limit,
        ),
    )(out1_p, tgt_p, invb_p)

    loss = -jnp.sum(lpart) / B
    if B_pad != B or C_p != C:
        newt = newt[:B, :C]
    return loss, feat_mean, newt


@functools.partial(jax.jit, donate_argnums=(0,))
def _scatter_rows(confidence, index, rows):
    """In-place-able (donated) row update of the confidence matrix."""
    return confidence.at[index].set(rows.astype(confidence.dtype))


class ProdenLossRECORDS:
    """Stateful wrapper mirroring the PyTorch module's forward semantics."""

    def __init__(self, confidence, block_b=None):
        self.confidence = confidence            # [N, C]
        self.feat_mean = None                   # [1, D] once set
        self.block_b = block_b

    def forward(self, output1, feat, fc_weight_t, fc_bias, index,
                update_target=True):
        # target = self.confidence[index, :]
        # TODO(synk): move the confidence row gather/scatter into the kernel
        # (scalar-prefetched `index` + pl.Element row blocks +
        # input_output_aliases) so the row update is fully fused in-place.
        target = jnp.take(self.confidence, index, axis=0)

        D = feat.shape[1]
        prev_fm = (self.feat_mean if self.feat_mean is not None
                   else jnp.zeros((1, D), jnp.float32))

        loss, new_fm, new_target = proden_records_fused(
            output1, target, feat, prev_fm, fc_weight_t, fc_bias,
            block_b=self.block_b)

        self.feat_mean = new_fm
        if update_target:
            self.confidence = _scatter_rows(self.confidence, index, new_target)
        return loss


def _reference_step(conf, fm, out1, ft, w, b, idx):
    """Pure-JAX transliteration of the PyTorch forward, for validation."""
    tgt = jnp.take(conf, idx, axis=0)
    p = jax.nn.softmax(out1, axis=1)
    loss = -jnp.sum(tgt * jnp.log(p)) / out1.shape[0]
    fb = jnp.mean(ft, axis=0, keepdims=True)
    fm = 0.1 * fb if fm is None else 0.9 * fm + 0.1 * fb
    bias = jax.nn.softmax(fm @ w.T + b[None, :], axis=1)
    out2 = jax.nn.softmax(out1 - jnp.log(bias + 1e-9), axis=1)
    mask = (tgt > 0).astype(jnp.float32)
    r = mask * out2
    r = r / jnp.sum(r, axis=1, keepdims=True)
    return loss, fm, conf.at[idx].set(r)


def _run_case(B, C, D, N, block_b, key):
    k1, k2, k3, k4, k5, k6 = jax.random.split(key, 6)

    # Partial-label confidence [N, C]: random candidate sets, row-normalized.
    cand = (jax.random.uniform(k1, (N, C)) < 0.3).astype(jnp.float32)
    true_lbl = jax.random.randint(k2, (N,), 0, C)
    cand = cand.at[jnp.arange(N), true_lbl].set(1.0)
    confidence = cand / jnp.sum(cand, axis=1, keepdims=True)

    # fc is nn.Linear(D, C): weight [C, D], bias [C].  Transpose hoisted once.
    fc_weight = 0.1 * jax.random.normal(k3, (C, D), dtype=jnp.float32)
    fc_bias = 0.01 * jax.random.normal(k4, (C,), dtype=jnp.float32)
    fc_weight_t = fc_weight.T                                # [D, C]

    output1 = jax.random.normal(k5, (B, C), dtype=jnp.float32)   # logits
    feat = jax.random.normal(k6, (B, D), dtype=jnp.float32)      # features
    index = (jnp.arange(B, dtype=jnp.int32) * 3) % N

    # Module owns its own copy (its buffer gets donated on each update).
    loss_fn = ProdenLossRECORDS(jnp.copy(confidence), block_b=block_b)

    ref_conf, ref_fm = confidence, None
    for _ in range(2):   # 1st call: feat_mean-init branch; 2nd call: EMA branch
        loss = loss_fn.forward(output1, feat, fc_weight_t, fc_bias, index, True)
        ref_loss, ref_fm, ref_conf = _reference_step(
            ref_conf, ref_fm, output1, feat, fc_weight, fc_bias, index)
        jax.block_until_ready((loss, loss_fn.confidence, loss_fn.feat_mean))

        assert jnp.isfinite(loss)
        assert jnp.allclose(loss, ref_loss, atol=2e-5, rtol=2e-5)
        assert jnp.allclose(loss_fn.feat_mean, ref_fm, atol=2e-5, rtol=2e-5)
        assert jnp.allclose(loss_fn.confidence, ref_conf, atol=2e-5, rtol=2e-5)

    row_sums = jnp.sum(jnp.take(loss_fn.confidence, index, axis=0), axis=1)
    assert jnp.allclose(row_sums, 1.0, atol=1e-5)


if __name__ == "__main__":
    key0, key1 = jax.random.split(jax.random.PRNGKey(0))
    # Small-C path: no class padding (block last dim = C = 20), two batch tiles.
    _run_case(B=16, C=20, D=32, N=64, block_b=8, key=key0)
    # Padded path: C=250 -> 256 lanes, B=20 -> 24 rows, auto tile/VMEM sizing.
    _run_case(B=20, C=250, D=16, N=40, block_b=None, key=key1)
    print("KERNEL_OK")
</pallas_src>

<mosaic_0001>
module attributes {stable_mosaic.version = 11 : i64} {
  func.func @_loss_newtarget_kernel(%arg0: i32, %arg1: memref<8x20xf32, #tpu.memory_space<vmem>>, %arg2: memref<8x20xf32, #tpu.memory_space<vmem>>, %arg3: memref<1x20xf32, #tpu.memory_space<vmem>>, %arg4: memref<8x20xf32, #tpu.memory_space<vmem>>, %arg5: memref<1x1x20xf32, #tpu.memory_space<vmem>>) attributes {dimension_semantics = [#tpu.dimension_semantics<parallel>], iteration_bounds = array<i64: 2>, scalar_prefetch = 0 : i64, scratch_operands = 0 : i64, tpu.core_type = #tpu.core_type<tc>, window_params = [{transform_indices = @transform_0, window_bounds = array<i64: 8, 20>}, {transform_indices = @transform_1, window_bounds = array<i64: 8, 20>}, {pipeline_mode = #tpu.pipeline_mode<synchronous>, transform_indices = @transform_2, window_bounds = array<i64: 1, 20>}, {transform_indices = @transform_3, window_bounds = array<i64: 8, 20>}, {transform_indices = @transform_4, window_bounds = array<i64: 1, 1, 20>}]} {
    %c0 = arith.constant 0 : index
    %c0_0 = arith.constant 0 : index
    %0 = vector.load %arg1[%c0, %c0_0] : memref<8x20xf32, #tpu.memory_space<vmem>>, vector<8x20xf32>
    %c0_1 = arith.constant 0 : index
    %c0_2 = arith.constant 0 : index
    %1 = vector.load %arg2[%c0_1, %c0_2] : memref<8x20xf32, #tpu.memory_space<vmem>>, vector<8x20xf32>
    %cst = arith.constant dense<0xFF800000> : vector<8xf32>
    %2 = vector.multi_reduction <maximumf>, %0, %cst [1] : vector<8x20xf32> to vector<8xf32>
    %3 = vector.shape_cast %2 : vector<8xf32> to vector<8x1xf32>
    %4 = vector.broadcast %3 : vector<8x1xf32> to vector<8x20xf32>
    %5 = arith.subf %0, %4 : vector<8x20xf32>
    %6 = math.exp %5 : vector<8x20xf32>
    %cst_3 = arith.constant dense<0.000000e+00> : vector<8xf32>
    %7 = vector.multi_reduction <add>, %6, %cst_3 [1] : vector<8x20xf32> to vector<8xf32>
    %8 = vector.shape_cast %7 : vector<8xf32> to vector<8x1xf32>
    %9 = math.log %8 : vector<8x1xf32>
    %10 = vector.broadcast %9 : vector<8x1xf32> to vector<8x20xf32>
    %11 = arith.subf %5, %10 : vector<8x20xf32>
    %12 = arith.mulf %1, %11 : vector<8x20xf32>
    %cst_4 = arith.constant dense<0.000000e+00> : vector<20xf32>
    %13 = vector.multi_reduction <add>, %12, %cst_4 [0] : vector<8x20xf32> to vector<20xf32>
    %14 = vector.shape_cast %13 : vector<20xf32> to vector<1x20xf32>
    %15 = vector.shape_cast %14 : vector<1x20xf32> to vector<1x1x20xf32>
    %c0_5 = arith.constant 0 : index
    %c0_6 = arith.constant 0 : index
    %c0_7 = arith.constant 0 : index
    %16 = vector.load %arg5[%c0_5, %c0_6, %c0_7] : memref<1x1x20xf32, #tpu.memory_space<vmem>>, vector<1x1x20xf32>
    tpu.vector_store %arg5[%c0_5, %c0_6, %c0_7], %15 {strides = array<i32>} : memref<1x1x20xf32, #tpu.memory_space<vmem>>, vector<1x1x20xf32>,
    %c0_8 = arith.constant 0 : index
    %c0_9 = arith.constant 0 : index
    %17 = vector.load %arg3[%c0_8, %c0_9] : memref<1x20xf32, #tpu.memory_space<vmem>>, vector<1x20xf32>
    %18 = vector.broadcast %17 : vector<1x20xf32> to vector<8x20xf32>
    %19 = arith.mulf %6, %18 : vector<8x20xf32>
    %cst_10 = arith.constant 0.000000e+00 : f32
    %20 = vector.broadcast %cst_10 : f32 to vector<8x20xf32>
    %21 = arith.cmpf ogt, %1, %20 : vector<8x20xf32>
    %cst_11 = arith.constant 0.000000e+00 : f32
    %22 = vector.broadcast %cst_11 : f32 to vector<8x20xf32>
    %23 = arith.select %21, %19, %22 : vector<8x20xi1>, vector<8x20xf32>
    %cst_12 = arith.constant dense<0.000000e+00> : vector<8xf32>
    %24 = vector.multi_reduction <add>, %23, %cst_12 [1] : vector<8x20xf32> to vector<8xf32>
    %25 = vector.shape_cast %24 : vector<8xf32> to vector<8x1xf32>
    %cst_13 = arith.constant 0.000000e+00 : f32
    %26 = vector.broadcast %cst_13 : f32 to vector<8x1xf32>
    %27 = arith.cmpf ogt, %25, %26 : vector<8x1xf32>
    %cst_14 = arith.constant 1.000000e+00 : f32
    %28 = vector.broadcast %cst_14 : f32 to vector<8x1xf32>
    %29 = arith.select %27, %25, %28 : vector<8x1xi1>, vector<8x1xf32>
    %30 = vector.broadcast %29 : vector<8x1xf32> to vector<8x20xf32>
    %31 = arith.divf %23, %30 : vector<8x20xf32>
    %c0_15 = arith.constant 0 : index
    %c0_16 = arith.constant 0 : index
    %32 = vector.load %arg4[%c0_15, %c0_16] : memref<8x20xf32, #tpu.memory_space<vmem>>, vector<8x20xf32>
    tpu.vector_store %arg4[%c0_15, %c0_16], %31 {strides = array<i32>} : memref<8x20xf32, #tpu.memory_space<vmem>>, vector<8x20xf32>,
    return
  }
  func.func @transform_0(%arg0: i32) -> (i32, i32) {
    %c0_i32 = arith.constant 0 : i32
    %c0_i32_0 = arith.constant 0 : i32
    return %arg0, %c0_i32 : i32, i32
  }
  func.func @transform_1(%arg0: i32) -> (i32, i32) {
    %c0_i32 = arith.constant 0 : i32
    %c0_i32_0 = arith.constant 0 : i32
    return %arg0, %c0_i32 : i32, i32
  }
  func.func @transform_2(%arg0: i32) -> (i32, i32) {
    %c0_i32 = arith.constant 0 : i32
    %c0_i32_0 = arith.constant 0 : i32
    %c0_i32_1 = arith.constant 0 : i32
    return %c0_i32, %c0_i32_0 : i32, i32
  }
  func.func @transform_3(%arg0: i32) -> (i32, i32) {
    %c0_i32 = arith.constant 0 : i32
    %c0_i32_0 = arith.constant 0 : i32
    return %arg0, %c0_i32 : i32, i32
  }
  func.func @transform_4(%arg0: i32) -> (i32, i32, i32) {
    %c0_i32 = arith.constant 0 : i32
    %c0_i32_0 = arith.constant 0 : i32
    %c0_i32_1 = arith.constant 0 : i32
    return %arg0, %c0_i32, %c0_i32_0 : i32, i32, i32
  }
}

</mosaic_0001>

<llo_original>
// kernel: proden_records_fused.1
$region0: #{proden_records_fused.1}
  #allocation0 [shape = 'u32[]', space=smem, size = 0x4, offset = 0x4, fixed_abs, tag = 'smem constant byte address 0x4 - core index']
  #allocation1 [shape = 'u32[144,128]{1,0:T(1,128)}', space=vmem, size = 0x12000, scoped, tag = 'internal scratch']
  %s0 = inlined_call_operand.vmem [shape: f32[16,20], index: 0, kind: input, shape index: {}]
  %s1 = inlined_call_operand.vmem [shape: f32[16,20], index: 1, kind: input, shape index: {}]
  %s2 = inlined_call_operand.vmem [shape: f32[1,20], index: 2, kind: input, shape index: {}]
  %s3 = inlined_call_operand.hbm [shape: f32[16,20], index: 3, kind: output, shape index: {0}]
  %s4 = inlined_call_operand.vmem [shape: f32[2,1,20], index: 4, kind: output, shape index: {1}]
  %5 = xla_tuple %s3, %s4
  %s6 = sld [smem:[#allocation0]]
  $region53: #{proden_records_fused.1} parent=0
    _
  %s8 = ssub.s32 1, %s6
  %s9 = scalar_select 0, %s8, %s6
  $region1: #{proden_records_fused.1} parent=0
    #allocation2 [shape = 'u8[8192]{0}', space=vmem, size = 0x2000, scoped, tag = 'output window, operand 0']
    #allocation3 [shape = 's32[2]{0}', space=sflag, size = 0x8, scoped, tag = 'scoped memory for proden_records_fused.1']
    %10 = vsyncpa [#allocation3], 0
    %s11 = scalar_lea.sflag [#allocation3], 1
    %12 = vsyncpa %s11, 0
    loop: start=0, step=1, limit=4
    $region2: #{proden_records_fused.1} parent=1 // loop_pre_header
      _
    $region3: #{proden_records_fused.1} parent=1 // loop_header
      %s14 = sphi 0, %s18
      %p15 = scmp.ge.s32.totalorder %s14, 4
      %s24 = sphi 0, %s26
      %s27 = sphi 0, %s24
      %s28 = sphi 0, %s27
      %s44 = sphi 0, %s28
      %s50 = sphi 0, %s52
      %s53 = sphi 0, %s50
      %s54 = sphi 0, %s53
      %s70 = sphi 0, %s54
      %s74 = sphi 0, %s74
      %s76 = sphi 0, %s74
      %s77 = sphi 0, %s76
      %s91 = sphi 0, %s77
      %s97 = sphi 0, %s99
      %s100 = sphi 0, %s97
      %s101 = sphi 0, %s100
      %s117 = sphi 0, %s101
      %s123 = sphi 0, %s125
      %s126 = sphi 0, %s123
      %s127 = sphi 0, %s126
      %s143 = sphi 0, %s127
    $region4: #{proden_records_fused.1} parent=1 // loop_header_branch
      %17 = sbr.rel (%p15) target = $region8
    $region5: #{proden_records_fused.1} parent=1 // loop_body
      %s19 = ssub.s32 %s14, 1
      %s20 = ssub.s32 %s14, 2
      %s21 = sadd.s32 %s14, 1
      %s22 = ssub.s32 %s14, %s21
      %p23 = scmp.eq.s32.totalorder %s22, 0
      %s25 = sadd.s32 %s24, 1
      %s26 = scalar_select %p23, %s24, %s25
      %p29 = pneg %p23
      %p30 = scmp.eq.s32.totalorder %s14, 1
      %p31 = por %p29, %p30
      %p32 = scmp.ne.s32.totalorder %s24, %s27
      %p33 = scmp.eq.s32.totalorder %s14, 0
      %p34 = por %p32, %p33
      %p35 = scmp.ne.s32.totalorder %s24, %s27
      %p36 = scmp.eq.s32.totalorder %s19, 1
      %p37 = por %p35, %p36
      %p38 = scmp.ne.s32.totalorder %s27, %s28
      %p39 = scmp.eq.s32.totalorder %s19, 0
      %p40 = por %p38, %p39
      %p41 = scmp.ne.s32.totalorder %s27, %s28
      %p42 = scmp.eq.s32.totalorder %s20, 1
      %p43 = por %p41, %p42
      %p45 = scmp.ne.s32.totalorder %s28, %s44
      %p46 = scmp.eq.s32.totalorder %s20, 0
      %p47 = por %p45, %p46
      %s48 = ssub.s32 %s14, %s21
      %p49 = scmp.eq.s32.totalorder %s48, 0
      %s51 = sadd.s32 %s50, 1
      %s52 = scalar_select %p49, %s50, %s51
      %p55 = pneg %p49
      %p56 = scmp.eq.s32.totalorder %s14, 1
      %p57 = por %p55, %p56
      %p58 = scmp.ne.s32.totalorder %s50, %s53
      %p59 = scmp.eq.s32.totalorder %s14, 0
      %p60 = por %p58, %p59
      %p61 = scmp.ne.s32.totalorder %s50, %s53
      %p62 = scmp.eq.s32.totalorder %s19, 1
      %p63 = por %p61, %p62
      %p64 = scmp.ne.s32.totalorder %s53, %s54
      %p65 = scmp.eq.s32.totalorder %s19, 0
      %p66 = por %p64, %p65
      %p67 = scmp.ne.s32.totalorder %s53, %s54
      %p68 = scmp.eq.s32.totalorder %s20, 1
      %p69 = por %p67, %p68
      %p71 = scmp.ne.s32.totalorder %s54, %s70
      %p72 = scmp.eq.s32.totalorder %s20, 0
      %p73 = por %p71, %p72
      %s75 = sadd.s32 %s74, 1
      %p78 = scmp.eq.s32.totalorder %s14, 1
      %p79 = scmp.ne.s32.totalorder %s74, %s76
      %p80 = scmp.eq.s32.totalorder %s14, 0
      %p81 = por %p79, %p80
      %p82 = scmp.ne.s32.totalorder %s74, %s76
      %p83 = scmp.eq.s32.totalorder %s19, 1
      %p84 = por %p82, %p83
      %p85 = scmp.ne.s32.totalorder %s76, %s77
      %p86 = scmp.eq.s32.totalorder %s19, 0
      %p87 = por %p85, %p86
      %p88 = scmp.ne.s32.totalorder %s76, %s77
      %p89 = scmp.eq.s32.totalorder %s20, 1
      %p90 = por %p88, %p89
      %p92 = scmp.ne.s32.totalorder %s77, %s91
      %p93 = scmp.eq.s32.totalorder %s20, 0
      %p94 = por %p92, %p93
      %s95 = ssub.s32 %s14, %s21
      %p96 = scmp.eq.s32.totalorder %s95, 0
      %s98 = sadd.s32 %s97, 1
      %s99 = scalar_select %p96, %s97, %s98
      %p102 = pneg %p96
      %p103 = scmp.eq.s32.totalorder %s14, 1
      %p104 = por %p102, %p103
      %p105 = scmp.ne.s32.totalorder %s97, %s100
      %p106 = scmp.eq.s32.totalorder %s14, 0
      %p107 = por %p105, %p106
      %p108 = scmp.ne.s32.totalorder %s97, %s100
      %p109 = scmp.eq.s32.totalorder %s19, 1
      %p110 = por %p108, %p109
      %p111 = scmp.ne.s32.totalorder %s100, %s101
      %p112 = scmp.eq.s32.totalorder %s19, 0
      %p113 = por %p111, %p112
      %p114 = scmp.ne.s32.totalorder %s100, %s101
      %p115 = scmp.eq.s32.totalorder %s20, 1
      %p116 = por %p114, %p115
      %p118 = scmp.ne.s32.totalorder %s101, %s117
      %p119 = scmp.eq.s32.totalorder %s20, 0
      %p120 = por %p118, %p119
      %s121 = ssub.s32 %s14, %s21
      %p122 = scmp.eq.s32.totalorder %s121, 0
      %s124 = sadd.s32 %s123, 1
      %s125 = scalar_select %p122, %s123, %s124
      %p128 = pneg %p122
      %p129 = scmp.eq.s32.totalorder %s14, 1
      %p130 = por %p128, %p129
      %p131 = scmp.ne.s32.totalorder %s123, %s126
      %p132 = scmp.eq.s32.totalorder %s14, 0
      %p133 = por %p131, %p132
      %p134 = scmp.ne.s32.totalorder %s123, %s126
      %p135 = scmp.eq.s32.totalorder %s19, 1
      %p136 = por %p134, %p135
      %p137 = scmp.ne.s32.totalorder %s126, %s127
      %p138 = scmp.eq.s32.totalorder %s19, 0
      %p139 = por %p137, %p138
      %p140 = scmp.ne.s32.totalorder %s126, %s127
      %p141 = scmp.eq.s32.totalorder %s20, 1
      %p142 = por %p140, %p141
      %p144 = scmp.ne.s32.totalorder %s127, %s143
      %p145 = scmp.eq.s32.totalorder %s20, 0
      %p146 = por %p144, %p145
      %p147 = scmp.le.s32.totalorder 1, %s14
      %p148 = scmp.lt.s32.totalorder %s14, 3
      %p149 = pnand %p147, %p148
      %p150 = pneg %p149
      // Predicated region
      $region9: #{proden_records_fused.1} parent=5 // pred_check
        _
      $region10: #{proden_records_fused.1} parent=5 // pred_check_branch
        %152 = sbr.rel (%p149) target = $region12
      $region11: #{proden_records_fused.1} parent=5 // pred_region
        %s153 = ssub.s32 %s14, 1
        // Predicated region
        $region13: #{proden_records_fused.1} parent=11 // pred_check
          %p154 = pneg %p87
        $region14: #{proden_records_fused.1} parent=11 // pred_check_branch
          %156 = sbr.rel (%p154) target = $region16
        $region15: #{proden_records_fused.1} parent=11 // pred_region
          _
        $region16: #{proden_records_fused.1} parent=11 // pred_fallthru
          _
      $region12: #{proden_records_fused.1} parent=5 // pred_fallthru
        _
      %p157 = scmp.lt.s32.totalorder %s14, 2
      // Predicated region
      $region17: #{proden_records_fused.1} parent=5 // pred_check
        %p158 = pneg %p157
      $region18: #{proden_records_fused.1} parent=5 // pred_check_branch
        %160 = sbr.rel (%p158) target = $region20
      $region19: #{proden_records_fused.1} parent=5 // pred_region
        // Predicated region
        $region21: #{proden_records_fused.1} parent=19 // pred_check
          %p161 = pneg %p34
        $region22: #{proden_records_fused.1} parent=19 // pred_check_branch
          %163 = sbr.rel (%p161) target = $region24
        $region23: #{proden_records_fused.1} parent=19 // pred_region
          %p164 = scmp.lt.s32.totalorder %s14, 1
          %s165 = scalar_select %p164, %s14, 1
          %s166 = smul.addr %s165, 8
          %s167 = scalar_lea.vmem %s0, %s166
        $region24: #{proden_records_fused.1} parent=19 // pred_fallthru
          _
        // Predicated region
        $region25: #{proden_records_fused.1} parent=19 // pred_check
          %p168 = pneg %p60
        $region26: #{proden_records_fused.1} parent=19 // pred_check_branch
          %170 = sbr.rel (%p168) target = $region28
        $region27: #{proden_records_fused.1} parent=19 // pred_region
          %p171 = scmp.lt.s32.totalorder %s14, 1
          %s172 = scalar_select %p171, %s14, 1
          %s173 = smul.addr %s172, 8
          %s174 = scalar_lea.vmem %s1, %s173
        $region28: #{proden_records_fused.1} parent=19 // pred_fallthru
          _
      $region20: #{proden_records_fused.1} parent=5 // pred_fallthru
        _
      %p175 = scmp.le.s32.totalorder 1, %s14
      %p176 = scmp.lt.s32.totalorder %s14, 3
      %p177 = pnand %p175, %p176
      %p178 = pneg %p177
      // Predicated region
      $region29: #{proden_records_fused.1} parent=5 // pred_check
        _
      $region30: #{proden_records_fused.1} parent=5 // pred_check_branch
        %180 = sbr.rel (%p177) target = $region32
      $region31: #{proden_records_fused.1} parent=5 // pred_region
        %s181 = ssub.s32 %s14, 1
        %p182 = scmp.lt.s32.totalorder %s19, 1
        %s183 = scalar_select %p182, %s19, 1
        %s184 = smul.addr %s183, 8
        %s185 = scalar_lea.vmem %s0, %s184
        %p186 = pneg %p40
        %p187 = pneg %p37
        %p188 = scmp.lt.s32.totalorder %s19, 1
        %s189 = scalar_select %p188, %s19, 1
        %s190 = smul.addr %s189, 8
        %s191 = scalar_lea.vmem %s1, %s190
        %p192 = pneg %p66
        %p193 = pneg %p63
        %p194 = pneg %p87
        %p195 = pneg %p84
        %p196 = pneg %p113
        %p197 = pneg %p110
        %s198 = sand.u32 %s100, 1
        %s199 = scalar_lea.sflag [#allocation3], %s198
        %s200 = sand.u32 %s100, 1
        %s201 = smul.addr %s200, 8
        %s202 = scalar_lea.vmem [#allocation2], %s201
        %p203 = pneg %p139
        %p204 = pneg %p136
        %p205 = scmp.lt.s32.totalorder %s19, 1
        %s206 = scalar_select %p205, %s19, 1
        %s207 = scalar_lea.vmem %s4, %s206
        %p208 = scmp.lt.s32.totalorder %s19, 1
        %s209 = scalar_select %p208, %s19, 1
        %s210 = smul.addr %s209, 8
        %s211 = scalar_lea.vmem %s0, %s210
        %p212 = scmp.lt.s32.totalorder %s19, 1
        %s213 = scalar_select %p212, %s19, 1
        %s214 = smul.addr %s213, 8
        %s215 = scalar_lea.vmem %s1, %s214
        %p216 = scmp.lt.s32.totalorder %s19, 1
        %s217 = scalar_select %p216, %s19, 1
        %s218 = scalar_lea.vmem %s4, %s217
        %v219 = vld [vmem:[%s211] sm:$0xff]
        %v220 = vld [vmem:[%s215] sm:$0xff]
        %vm221 = vcmask 162816
        %v222 = vsel %vm221, %v219, -inf
        %223 = vmax.xlane.f32.xlu0 %v222
        %v224 = vpop.xlane.xlu0 %223
        %v225 = vsub.f32 %v219, %v224
        %v226 = vmul.f32 %v225, 1.442695
        %v227 = vpow.pop %v226
        %v228 = vsel %vm221, %v227, 0.0
        %229 = vadd.xlane.f32.xlu0 %v228
        %v230 = vpop.xlane.xlu0 %229
        %v231 = vlog2.pop %v230
        %v232 = vmul.f32 %v231, 0.6931472
        %v233 = vsub.f32 %v225, %v232
        %v234 = vmul.f32 %v220, %v233
        %v235 = vsel %vm221, %v234, 0.0
        %v236 = vrot.slane %v235, 4
        %v237 = vadd.f32 %v235, %v236
        %v238 = vrot.slane %v237, 2
        %v239 = vadd.f32 %v237, %v238
        %v240 = vrot.slane %v239, 1
        %v241 = vadd.f32 %v239, %v240
        %vm242 = vcmask 155648
        %243 = vst.msk [vmem:[%s218] sm:$0x1] %vm242, %v241
        %v244 = vld [vmem:[%s2] sm:$0x1]
        %v246 = vlaneseq
        %v247 = vshrl.u32 %v246, 7
        %v248 = vsub.s32 0, %v247
        %v249 = vrot.slane %v244, %v248
        %v251 = vmul.f32 %v227, %v249
        %vm252 = vcmp.gt.f32.partialorder %v220, 0.0
        %v253 = vsel %vm252, %v251, 0.0
        %v254 = vsel %vm221, %v253, 0.0
        %255 = vadd.xlane.f32.xlu0 %v254
        %v256 = vpop.xlane.xlu0 %255
        %vm257 = vcmp.gt.f32.partialorder %v256, 0.0
        %v258 = vsel %vm257, %v256, 1.0
        %v259 = vrcp.pop %v258
        %v260 = vmul.f32 %v253, %v259
        %261 = vst.msk [vmem:[%s202] sm:$0xff] %vm221, %v260
        %s262 = sand.u32 %s100, 1
        %s263 = scalar_lea.sflag [#allocation3], %s262
        %s264 = sand.u32 %s100, 1
        %s265 = smul.addr %s264, 8
        %s266 = scalar_lea.vmem [#allocation2], %s265
        %p267 = scmp.lt.s32.totalorder %s19, 1
        %s268 = scalar_select %p267, %s19, 1
        %s269 = scalar_lea.vmem %s4, %s268
        // Predicated region
        $region33: #{proden_records_fused.1} parent=31 // pred_check
          %p270 = pneg %p110
        $region34: #{proden_records_fused.1} parent=31 // pred_check_branch
          %272 = sbr.rel (%p270) target = $region36
        $region35: #{proden_records_fused.1} parent=31 // pred_region
          %s274 = ssub.s32 128, 128
          %275 = vsyncadd %s263, %s274
          %s276 = smul.addr %s19, 128
          %s277 = scalar_lea.hbm %s3, %s276
          %s279 = sshll.u32 %s266, 4
          %s280 = int_to_ptr.vmem [resolvable:$true] %s279
          %282 = dma.vmem_to_hbm [thread:$0]  %s280, 128, %s277, %s263
        $region36: #{proden_records_fused.1} parent=31 // pred_fallthru
          _
        // Predicated region
        $region37: #{proden_records_fused.1} parent=31 // pred_check
          %p283 = pneg %p136
        $region38: #{proden_records_fused.1} parent=31 // pred_check_branch
          %285 = sbr.rel (%p283) target = $region40
        $region39: #{proden_records_fused.1} parent=31 // pred_region
          _
        $region40: #{proden_records_fused.1} parent=31 // pred_fallthru
          _
      $region32: #{proden_records_fused.1} parent=5 // pred_fallthru
        _
      %p286 = scmp.le.s32.totalorder 2, %s14
      // Predicated region
      $region41: #{proden_records_fused.1} parent=5 // pred_check
        %p287 = pneg %p286
      $region42: #{proden_records_fused.1} parent=5 // pred_check_branch
        %289 = sbr.rel (%p287) target = $region44
      $region43: #{proden_records_fused.1} parent=5 // pred_region
        %s290 = ssub.s32 %s14, 2
        // Predicated region
        $region45: #{proden_records_fused.1} parent=43 // pred_check
          %p291 = pneg %p116
        $region46: #{proden_records_fused.1} parent=43 // pred_check_branch
          %293 = sbr.rel (%p291) target = $region48
        $region47: #{proden_records_fused.1} parent=43 // pred_region
          %s294 = sand.u32 %s101, 1
          %s295 = scalar_lea.sflag [#allocation3], %s294
          %s296 = sand.u32 %s101, 1
          %s297 = smul.addr %s296, 8
          %s298 = scalar_lea.vmem [#allocation2], %s297
          %299 = dma.done %s295, 128
        $region48: #{proden_records_fused.1} parent=43 // pred_fallthru
          _
        // Predicated region
        $region49: #{proden_records_fused.1} parent=43 // pred_check
          %p300 = pneg %p142
        $region50: #{proden_records_fused.1} parent=43 // pred_check_branch
          %302 = sbr.rel (%p300) target = $region52
        $region51: #{proden_records_fused.1} parent=43 // pred_region
          %p303 = scmp.lt.s32.totalorder %s20, 1
          %s304 = scalar_select %p303, %s20, 1
          %s305 = scalar_lea.vmem %s4, %s304
        $region52: #{proden_records_fused.1} parent=43 // pred_fallthru
          _
      $region44: #{proden_records_fused.1} parent=5 // pred_fallthru
        _
    $region6: #{proden_records_fused.1} parent=1 // loop_footer
      %s18 = sadd.s32 1, %s14
    $region7: #{proden_records_fused.1} parent=1 // loop_footer_branch
      %13 = sbr.rel target = $region3
    $region8: #{proden_records_fused.1} parent=1 // loop_exit
      _
    %306 = vsyncpa [#allocation3], 1
    %s307 = scalar_lea.sflag [#allocation3], 1
    %308 = vsyncpa %s307, 1

</llo_original>
